<compile_context>
chip_gen: v7x
topology: tpu7x:2x2x1
jax: 0.10.0
libtpu: 0.0.40
codegen_flags: <defaults>
</compile_context>

<pallas_src>
import math
import functools

import jax
import jax.numpy as jnp
from jax.experimental import pallas as pl
from jax.experimental.pallas import tpu as pltpu

INPUT_DIM = 256


def _autoencoder_kernel(x_ref, we_t_ref, be_ref, wd_t_ref, bd_ref,
                        enc_ref, dec_ref):
    # One batch tile per grid step; weights/biases fully resident in VMEM.
    w_dtype = we_t_ref.dtype
    # Per-tile cast (no-op when x already matches the weight dtype); this is
    # VPU work hidden under the DMA pipeline, not a separate HBM pass.
    x = x_ref[...].astype(w_dtype)                                    # (tb, d)
    z = jnp.dot(x, we_t_ref[...], preferred_element_type=jnp.float32)
    enc_f32 = jnp.tanh(z + be_ref[...])                               # f32 (tb, d_tilde)
    enc = enc_f32.astype(enc_ref.dtype)
    enc_ref[...] = enc
    # Decoder consumes the rounded `enc` (single-dtype MXU pass in bf16, and
    # decoded is reproducible from the returned encoded).
    dec = (jnp.dot(enc.astype(w_dtype), wd_t_ref[...],
                   preferred_element_type=jnp.float32)
           + bd_ref[...])                                             # f32 (tb, d)
    dec_ref[...] = dec.astype(dec_ref.dtype)


def _choose_tile_b(B, d, d_tilde, io_itemsize, min_steps=8):
    """Pick the largest batch tile that:
      (a) divides B and respects sublane granularity,
      (b) keeps double-buffered I/O streams + f32 temporaries under ~24 MiB
          (safe inside a 32 MiB scoped-VMEM limit on v7x/v6e/v5e),
      (c) is capped per itemsize (f32 4096 / bf16 8192 rows),
      (d) leaves the grid >= min_steps long when B allows, so both v7x
          TensorCores and the DMA double-buffer have work."""
    sublane = 16 if io_itemsize == 2 else 8
    budget = 24 * 1024 * 1024
    hard_cap = 8192 if io_itemsize == 2 else 4096
    # Double-buffered x/enc/dec streams + compiler f32 temporaries (z, enc, dec).
    bytes_per_row = (2 * (d + d + d_tilde) * io_itemsize
                     + (2 * d_tilde + d) * 4)
    cap = max(sublane, min(hard_cap, budget // bytes_per_row))

    divisors = [t for t in range(sublane, min(B, cap) + 1, sublane)
                if B % t == 0]
    if not divisors:
        return B                         # tiny/odd B: single full block (grid of 1)
    deep = [t for t in divisors if B // t >= min_steps]
    if deep:
        return max(deep)                 # biggest tile that still keeps the grid deep
    piped = [t for t in divisors if B // t >= 2]
    if piped:
        return max(piped)                # at least keep double-buffering alive
    return max(divisors)


def prepare_params(w_enc, b_enc, w_dec, b_dec, *, tied=False,
                   weight_dtype=jnp.float32):
    """One-time (per model) param prep: orient weights for row-major MXU matmuls
    and pre-cast. Call this OUTSIDE the per-step forward so the transposes/casts
    are not re-dispatched every call.
      we_t = W_enc.T : (d, d_tilde)    wd_t = W_dec.T : (d_tilde, d)
    Tied weights: W_dec = W_enc.T  =>  W_dec.T == W_enc, so reuse w_enc directly."""
    d_tilde, d = w_enc.shape
    weight_dtype = jnp.dtype(weight_dtype)
    we_t = jnp.transpose(w_enc).astype(weight_dtype)                     # (d, d_tilde)
    wd_t = (w_enc if tied else jnp.transpose(w_dec)).astype(weight_dtype)  # (d_tilde, d)
    be = b_enc.reshape(1, d_tilde).astype(jnp.float32)
    bd = b_dec.reshape(1, d).astype(jnp.float32)
    return we_t, be, wd_t, bd


@functools.partial(jax.jit, static_argnames=("tile_b",))
def my_autoencoder_forward(x, we_t, be, wd_t, bd, *, tile_b=None):
    """x: (B, d) in its native dtype (f32 or bf16 — no wrapper-side cast).
    we_t/be/wd_t/bd: output of prepare_params (pre-oriented, pre-cast).
    Returns (encoded (B, d_tilde), decoded (B, d)) in x.dtype."""
    B, d = x.shape
    d_tilde = we_t.shape[1]
    out_dtype = x.dtype
    io_itemsize = jnp.dtype(out_dtype).itemsize

    if tile_b is None:
        tile_b = _choose_tile_b(B, d, d_tilde, io_itemsize)
    if tile_b != B:
        assert B % tile_b == 0, f"tile_b={tile_b} must divide B={B}"

    grid = (B // tile_b,)
    w_itemsize = jnp.dtype(we_t.dtype).itemsize

    # Advisory cost hint so XLA schedules surrounding ops around this
    # memory-bound custom call sensibly.
    cost = pl.CostEstimate(
        flops=4 * B * d * d_tilde,                        # two matmuls
        transcendentals=B * d_tilde,                      # tanh
        bytes_accessed=(x.size * io_itemsize
                        + (we_t.size + wd_t.size) * w_itemsize
                        + (be.size + bd.size) * 4
                        + (B * d_tilde + B * d) * io_itemsize))

    encoded, decoded = pl.pallas_call(
        _autoencoder_kernel,
        out_shape=(
            jax.ShapeDtypeStruct((B, d_tilde), out_dtype),
            jax.ShapeDtypeStruct((B, d), out_dtype),
        ),
        grid_spec=pltpu.PrefetchScalarGridSpec(
            num_scalar_prefetch=0,
            grid=grid,
            in_specs=[
                pl.BlockSpec((tile_b, d), lambda i: (i, 0)),         # x tile
                pl.BlockSpec((d, d_tilde), lambda i: (0, 0)),        # W_enc.T (resident)
                pl.BlockSpec((1, d_tilde), lambda i: (0, 0)),        # b_enc
                pl.BlockSpec((d_tilde, d), lambda i: (0, 0)),        # W_dec.T (resident)
                pl.BlockSpec((1, d), lambda i: (0, 0)),              # b_dec
            ],
            out_specs=[
                pl.BlockSpec((tile_b, d_tilde), lambda i: (i, 0)),   # encoded
                pl.BlockSpec((tile_b, d), lambda i: (i, 0)),         # decoded
            ],
        ),
        compiler_params=pltpu.CompilerParams(
            # Batch axis is embarrassingly parallel -> megacore sharding on
            # multi-TensorCore chips once the grid has >= 2 steps.
            dimension_semantics=("parallel",),
            # 32 MiB scoped VMEM: safe on v7x's 64 MiB-per-TC VMEM and on
            # v5e/v6e's 128 MiB; the tile chooser keeps the working set <= ~24 MiB.
            vmem_limit_bytes=32 * 1024 * 1024,
        ),
        cost_estimate=cost,
    )(x, we_t, be, wd_t, bd)
    return encoded, decoded


def init_params(key, d, d_tilde, constrained=True):
    """Deterministic init matching MyLinear's uniform(-bound, bound)."""
    k1, k2, k3, k4 = jax.random.split(key, 4)
    bound_enc = math.sqrt(6) / math.sqrt(1 + d + d_tilde)
    w_enc = jax.random.uniform(k1, (d_tilde, d), jnp.float32,
                               -bound_enc, bound_enc)
    b_enc = jax.random.uniform(k2, (d_tilde,), jnp.float32,
                               -bound_enc, bound_enc)
    bound_dec = math.sqrt(6) / math.sqrt(1 + d_tilde + d)
    if constrained:
        w_dec = jnp.transpose(w_enc)      # tied: W_dec = W_enc.T, shape (d, d_tilde)
    else:
        w_dec = jax.random.uniform(k3, (d, d_tilde), jnp.float32,
                                   -bound_dec, bound_dec)
    b_dec = jax.random.uniform(k4, (d,), jnp.float32, -bound_dec, bound_dec)
    return w_enc, b_enc, w_dec, b_dec


if __name__ == "__main__":
    B, d, d_tilde = 64, INPUT_DIM, 32
    key = jax.random.PRNGKey(0)
    kx, kp = jax.random.split(key)
    x = jax.random.normal(kx, (B, d), dtype=jnp.float32)
    w_enc, b_enc, w_dec, b_dec = init_params(kp, d, d_tilde, constrained=True)

    # ---- f32 path: params prepared ONCE, outside the per-call forward. ----
    params_f32 = prepare_params(w_enc, b_enc, w_dec, b_dec, tied=True)
    encoded, decoded = my_autoencoder_forward(x, *params_f32)
    jax.block_until_ready((encoded, decoded))

    # Pure-JAX reference (same semantics as the PyTorch forward).
    enc_ref = jnp.tanh(x @ w_enc.T + b_enc)
    dec_ref = enc_ref @ w_dec.T + b_dec
    assert encoded.shape == (B, d_tilde) and decoded.shape == (B, d)
    assert jnp.allclose(encoded, enc_ref, atol=1e-5, rtol=1e-5)
    assert jnp.allclose(decoded, dec_ref, atol=1e-5, rtol=1e-5)

    # ---- bf16 production path: the PRODUCER supplies bf16 x (done once here,
    # not per forward call) and weights were pre-cast once in prepare_params,
    # so the forward itself adds zero extra HBM traffic. ----
    params_bf16 = prepare_params(w_enc, b_enc, w_dec, b_dec, tied=True,
                                 weight_dtype=jnp.bfloat16)
    x_bf16 = x.astype(jnp.bfloat16)
    enc16, dec16 = my_autoencoder_forward(x_bf16, *params_bf16)
    jax.block_until_ready((enc16, dec16))
    assert jnp.allclose(enc16.astype(jnp.float32), enc_ref, atol=8e-2)
    assert jnp.allclose(dec16.astype(jnp.float32), dec_ref, atol=8e-2)

    print("KERNEL_OK")
</pallas_src>

<mosaic_0001>
module attributes {stable_mosaic.version = 11 : i64} {
  func.func @_autoencoder_kernel(%arg0: i32, %arg1: memref<8x256xf32, #tpu.memory_space<vmem>>, %arg2: memref<256x32xf32, #tpu.memory_space<vmem>>, %arg3: memref<1x32xf32, #tpu.memory_space<vmem>>, %arg4: memref<32x256xf32, #tpu.memory_space<vmem>>, %arg5: memref<1x256xf32, #tpu.memory_space<vmem>>, %arg6: memref<8x32xf32, #tpu.memory_space<vmem>>, %arg7: memref<8x256xf32, #tpu.memory_space<vmem>>) attributes {dimension_semantics = [#tpu.dimension_semantics<parallel>], iteration_bounds = array<i64: 8>, scalar_prefetch = 0 : i64, scratch_operands = 0 : i64, tpu.core_type = #tpu.core_type<tc>, window_params = [{transform_indices = @transform_0, window_bounds = array<i64: 8, 256>}, {pipeline_mode = #tpu.pipeline_mode<synchronous>, transform_indices = @transform_1, window_bounds = array<i64: 256, 32>}, {pipeline_mode = #tpu.pipeline_mode<synchronous>, transform_indices = @transform_2, window_bounds = array<i64: 1, 32>}, {pipeline_mode = #tpu.pipeline_mode<synchronous>, transform_indices = @transform_3, window_bounds = array<i64: 32, 256>}, {pipeline_mode = #tpu.pipeline_mode<synchronous>, transform_indices = @transform_4, window_bounds = array<i64: 1, 256>}, {transform_indices = @transform_5, window_bounds = array<i64: 8, 32>}, {transform_indices = @transform_6, window_bounds = array<i64: 8, 256>}]} {
    %c0 = arith.constant 0 : index
    %c0_0 = arith.constant 0 : index
    %0 = vector.load %arg1[%c0, %c0_0] : memref<8x256xf32, #tpu.memory_space<vmem>>, vector<8x256xf32>
    %c0_1 = arith.constant 0 : index
    %c0_2 = arith.constant 0 : index
    %1 = vector.load %arg2[%c0_1, %c0_2] : memref<256x32xf32, #tpu.memory_space<vmem>>, vector<256x32xf32>
    %cst = arith.constant dense<0.000000e+00> : vector<8x32xf32>
    %2 = tpu.matmul %0, %1, %cst {dimension_numbers = #tpu.dot_dimension_numbers<[1], [0], [0], [1], [0, 0, 1, 1], [], []>} : vector<8x256xf32>, vector<256x32xf32>, vector<8x32xf32> -> vector<8x32xf32>
    %c0_3 = arith.constant 0 : index
    %c0_4 = arith.constant 0 : index
    %3 = vector.load %arg3[%c0_3, %c0_4] : memref<1x32xf32, #tpu.memory_space<vmem>>, vector<1x32xf32>
    %4 = vector.broadcast %3 : vector<1x32xf32> to vector<8x32xf32>
    %5 = arith.addf %2, %4 : vector<8x32xf32>
    %6 = math.tanh %5 : vector<8x32xf32>
    %c0_5 = arith.constant 0 : index
    %c0_6 = arith.constant 0 : index
    %7 = vector.load %arg6[%c0_5, %c0_6] : memref<8x32xf32, #tpu.memory_space<vmem>>, vector<8x32xf32>
    tpu.vector_store %arg6[%c0_5, %c0_6], %6 {strides = array<i32>} : memref<8x32xf32, #tpu.memory_space<vmem>>, vector<8x32xf32>,
    %c0_7 = arith.constant 0 : index
    %c0_8 = arith.constant 0 : index
    %8 = vector.load %arg4[%c0_7, %c0_8] : memref<32x256xf32, #tpu.memory_space<vmem>>, vector<32x256xf32>
    %cst_9 = arith.constant dense<0.000000e+00> : vector<8x256xf32>
    %9 = tpu.matmul %6, %8, %cst_9 {dimension_numbers = #tpu.dot_dimension_numbers<[1], [0], [0], [1], [0, 0, 1, 1], [], []>} : vector<8x32xf32>, vector<32x256xf32>, vector<8x256xf32> -> vector<8x256xf32>
    %c0_10 = arith.constant 0 : index
    %c0_11 = arith.constant 0 : index
    %10 = vector.load %arg5[%c0_10, %c0_11] : memref<1x256xf32, #tpu.memory_space<vmem>>, vector<1x256xf32>
    %11 = vector.broadcast %10 : vector<1x256xf32> to vector<8x256xf32>
    %12 = arith.addf %9, %11 : vector<8x256xf32>
    %c0_12 = arith.constant 0 : index
    %c0_13 = arith.constant 0 : index
    %13 = vector.load %arg7[%c0_12, %c0_13] : memref<8x256xf32, #tpu.memory_space<vmem>>, vector<8x256xf32>
    tpu.vector_store %arg7[%c0_12, %c0_13], %12 {strides = array<i32>} : memref<8x256xf32, #tpu.memory_space<vmem>>, vector<8x256xf32>,
    return
  }
  func.func @transform_0(%arg0: i32) -> (i32, i32) {
    %c0_i32 = arith.constant 0 : i32
    %c0_i32_0 = arith.constant 0 : i32
    return %arg0, %c0_i32 : i32, i32
  }
  func.func @transform_1(%arg0: i32) -> (i32, i32) {
    %c0_i32 = arith.constant 0 : i32
    %c0_i32_0 = arith.constant 0 : i32
    %c0_i32_1 = arith.constant 0 : i32
    return %c0_i32, %c0_i32_0 : i32, i32
  }
  func.func @transform_2(%arg0: i32) -> (i32, i32) {
    %c0_i32 = arith.constant 0 : i32
    %c0_i32_0 = arith.constant 0 : i32
    %c0_i32_1 = arith.constant 0 : i32
    return %c0_i32, %c0_i32_0 : i32, i32
  }
  func.func @transform_3(%arg0: i32) -> (i32, i32) {
    %c0_i32 = arith.constant 0 : i32
    %c0_i32_0 = arith.constant 0 : i32
    %c0_i32_1 = arith.constant 0 : i32
    return %c0_i32, %c0_i32_0 : i32, i32
  }
  func.func @transform_4(%arg0: i32) -> (i32, i32) {
    %c0_i32 = arith.constant 0 : i32
    %c0_i32_0 = arith.constant 0 : i32
    %c0_i32_1 = arith.constant 0 : i32
    return %c0_i32, %c0_i32_0 : i32, i32
  }
  func.func @transform_5(%arg0: i32) -> (i32, i32) {
    %c0_i32 = arith.constant 0 : i32
    %c0_i32_0 = arith.constant 0 : i32
    return %arg0, %c0_i32 : i32, i32
  }
  func.func @transform_6(%arg0: i32) -> (i32, i32) {
    %c0_i32 = arith.constant 0 : i32
    %c0_i32_0 = arith.constant 0 : i32
    return %arg0, %c0_i32 : i32, i32
  }
}

</mosaic_0001>

<llo_original>
// kernel: my_autoencoder_forward.1
$region0: #{my_autoencoder_forward.1}
  #allocation0 [shape = 'u32[]', space=smem, size = 0x4, offset = 0x4, fixed_abs, tag = 'smem constant byte address 0x4 - core index']
  #allocation1 [shape = 'u32[144,128]{1,0:T(1,128)}', space=vmem, size = 0x12000, scoped, tag = 'internal scratch']
  %s0 = inlined_call_operand.vmem [shape: f32[64,256], index: 0, kind: input, shape index: {}]
  %s1 = inlined_call_operand.vmem [shape: f32[256,32], index: 1, kind: input, shape index: {}]
  %s2 = inlined_call_operand.vmem [shape: f32[1,32], index: 2, kind: input, shape index: {}]
  %s3 = inlined_call_operand.vmem [shape: f32[32,256], index: 3, kind: input, shape index: {}]
  %s4 = inlined_call_operand.vmem [shape: f32[1,256], index: 4, kind: input, shape index: {}]
  %s5 = inlined_call_operand.vmem [shape: f32[64,32], index: 5, kind: output, shape index: {0}]
  %s6 = inlined_call_operand.hbm [shape: f32[64,256], index: 6, kind: output, shape index: {1}]
  %7 = xla_tuple %s5, %s6
  %s8 = sld [smem:[#allocation0]]
  $region61: #{my_autoencoder_forward.1} parent=0
    _
  %s10 = ssub.s32 1, %s8
  %s11 = scalar_select 0, %s10, %s8
  $region1: #{my_autoencoder_forward.1} parent=0
    #allocation2 [shape = 'u8[16384]{0}', space=vmem, size = 0x4000, scoped, tag = 'output window, operand 1']
    #allocation3 [shape = 's32[2]{0}', space=sflag, size = 0x8, scoped, tag = 'scoped memory for my_autoencoder_forward.1']
    %12 = vsyncpa [#allocation3], 0
    %s13 = scalar_lea.sflag [#allocation3], 1
    %14 = vsyncpa %s13, 0
    loop: start=0, step=1, limit=10
    $region2: #{my_autoencoder_forward.1} parent=1 // loop_pre_header
      _
    $region3: #{my_autoencoder_forward.1} parent=1 // loop_header
      %s16 = sphi 0, %s20
      %p17 = scmp.ge.s32.totalorder %s16, 10
      %s26 = sphi 0, %s28
      %s29 = sphi 0, %s26
      %s30 = sphi 0, %s29
      %s46 = sphi 0, %s30
      %s50 = sphi 0, %s50
      %s52 = sphi 0, %s50
      %s53 = sphi 0, %s52
      %s67 = sphi 0, %s53
      %s71 = sphi 0, %s71
      %s73 = sphi 0, %s71
      %s74 = sphi 0, %s73
      %s88 = sphi 0, %s74
      %s92 = sphi 0, %s92
      %s94 = sphi 0, %s92
      %s95 = sphi 0, %s94
      %s109 = sphi 0, %s95
      %s113 = sphi 0, %s113
      %s115 = sphi 0, %s113
      %s116 = sphi 0, %s115
      %s130 = sphi 0, %s116
      %s136 = sphi 0, %s138
      %s139 = sphi 0, %s136
      %s140 = sphi 0, %s139
      %s156 = sphi 0, %s140
      %s162 = sphi 0, %s164
      %s165 = sphi 0, %s162
      %s166 = sphi 0, %s165
      %s182 = sphi 0, %s166
    $region4: #{my_autoencoder_forward.1} parent=1 // loop_header_branch
      %19 = sbr.rel (%p17) target = $region8
    $region5: #{my_autoencoder_forward.1} parent=1 // loop_body
      %s21 = ssub.s32 %s16, 1
      %s22 = ssub.s32 %s16, 2
      %s23 = sadd.s32 %s16, 1
      %s24 = ssub.s32 %s16, %s23
      %p25 = scmp.eq.s32.totalorder %s24, 0
      %s27 = sadd.s32 %s26, 1
      %s28 = scalar_select %p25, %s26, %s27
      %p31 = pneg %p25
      %p32 = scmp.eq.s32.totalorder %s16, 7
      %p33 = por %p31, %p32
      %p34 = scmp.ne.s32.totalorder %s26, %s29
      %p35 = scmp.eq.s32.totalorder %s16, 0
      %p36 = por %p34, %p35
      %p37 = scmp.ne.s32.totalorder %s26, %s29
      %p38 = scmp.eq.s32.totalorder %s21, 7
      %p39 = por %p37, %p38
      %p40 = scmp.ne.s32.totalorder %s29, %s30
      %p41 = scmp.eq.s32.totalorder %s21, 0
      %p42 = por %p40, %p41
      %p43 = scmp.ne.s32.totalorder %s29, %s30
      %p44 = scmp.eq.s32.totalorder %s22, 7
      %p45 = por %p43, %p44
      %p47 = scmp.ne.s32.totalorder %s30, %s46
      %p48 = scmp.eq.s32.totalorder %s22, 0
      %p49 = por %p47, %p48
      %s51 = sadd.s32 %s50, 1
      %p54 = scmp.eq.s32.totalorder %s16, 7
      %p55 = scmp.ne.s32.totalorder %s50, %s52
      %p56 = scmp.eq.s32.totalorder %s16, 0
      %p57 = por %p55, %p56
      %p58 = scmp.ne.s32.totalorder %s50, %s52
      %p59 = scmp.eq.s32.totalorder %s21, 7
      %p60 = por %p58, %p59
      %p61 = scmp.ne.s32.totalorder %s52, %s53
      %p62 = scmp.eq.s32.totalorder %s21, 0
      %p63 = por %p61, %p62
      %p64 = scmp.ne.s32.totalorder %s52, %s53
      %p65 = scmp.eq.s32.totalorder %s22, 7
      %p66 = por %p64, %p65
      %p68 = scmp.ne.s32.totalorder %s53, %s67
      %p69 = scmp.eq.s32.totalorder %s22, 0
      %p70 = por %p68, %p69
      %s72 = sadd.s32 %s71, 1
      %p75 = scmp.eq.s32.totalorder %s16, 7
      %p76 = scmp.ne.s32.totalorder %s71, %s73
      %p77 = scmp.eq.s32.totalorder %s16, 0
      %p78 = por %p76, %p77
      %p79 = scmp.ne.s32.totalorder %s71, %s73
      %p80 = scmp.eq.s32.totalorder %s21, 7
      %p81 = por %p79, %p80
      %p82 = scmp.ne.s32.totalorder %s73, %s74
      %p83 = scmp.eq.s32.totalorder %s21, 0
      %p84 = por %p82, %p83
      %p85 = scmp.ne.s32.totalorder %s73, %s74
      %p86 = scmp.eq.s32.totalorder %s22, 7
      %p87 = por %p85, %p86
      %p89 = scmp.ne.s32.totalorder %s74, %s88
      %p90 = scmp.eq.s32.totalorder %s22, 0
      %p91 = por %p89, %p90
      %s93 = sadd.s32 %s92, 1
      %p96 = scmp.eq.s32.totalorder %s16, 7
      %p97 = scmp.ne.s32.totalorder %s92, %s94
      %p98 = scmp.eq.s32.totalorder %s16, 0
      %p99 = por %p97, %p98
      %p100 = scmp.ne.s32.totalorder %s92, %s94
      %p101 = scmp.eq.s32.totalorder %s21, 7
      %p102 = por %p100, %p101
      %p103 = scmp.ne.s32.totalorder %s94, %s95
      %p104 = scmp.eq.s32.totalorder %s21, 0
      %p105 = por %p103, %p104
      %p106 = scmp.ne.s32.totalorder %s94, %s95
      %p107 = scmp.eq.s32.totalorder %s22, 7
      %p108 = por %p106, %p107
      %p110 = scmp.ne.s32.totalorder %s95, %s109
      %p111 = scmp.eq.s32.totalorder %s22, 0
      %p112 = por %p110, %p111
      %s114 = sadd.s32 %s113, 1
      %p117 = scmp.eq.s32.totalorder %s16, 7
      %p118 = scmp.ne.s32.totalorder %s113, %s115
      %p119 = scmp.eq.s32.totalorder %s16, 0
      %p120 = por %p118, %p119
      %p121 = scmp.ne.s32.totalorder %s113, %s115
      %p122 = scmp.eq.s32.totalorder %s21, 7
      %p123 = por %p121, %p122
      %p124 = scmp.ne.s32.totalorder %s115, %s116
      %p125 = scmp.eq.s32.totalorder %s21, 0
      %p126 = por %p124, %p125
      %p127 = scmp.ne.s32.totalorder %s115, %s116
      %p128 = scmp.eq.s32.totalorder %s22, 7
      %p129 = por %p127, %p128
      %p131 = scmp.ne.s32.totalorder %s116, %s130
      %p132 = scmp.eq.s32.totalorder %s22, 0
      %p133 = por %p131, %p132
      %s134 = ssub.s32 %s16, %s23
      %p135 = scmp.eq.s32.totalorder %s134, 0
      %s137 = sadd.s32 %s136, 1
      %s138 = scalar_select %p135, %s136, %s137
      %p141 = pneg %p135
      %p142 = scmp.eq.s32.totalorder %s16, 7
      %p143 = por %p141, %p142
      %p144 = scmp.ne.s32.totalorder %s136, %s139
      %p145 = scmp.eq.s32.totalorder %s16, 0
      %p146 = por %p144, %p145
      %p147 = scmp.ne.s32.totalorder %s136, %s139
      %p148 = scmp.eq.s32.totalorder %s21, 7
      %p149 = por %p147, %p148
      %p150 = scmp.ne.s32.totalorder %s139, %s140
      %p151 = scmp.eq.s32.totalorder %s21, 0
      %p152 = por %p150, %p151
      %p153 = scmp.ne.s32.totalorder %s139, %s140
      %p154 = scmp.eq.s32.totalorder %s22, 7
      %p155 = por %p153, %p154
      %p157 = scmp.ne.s32.totalorder %s140, %s156
      %p158 = scmp.eq.s32.totalorder %s22, 0
      %p159 = por %p157, %p158
      %s160 = ssub.s32 %s16, %s23
      %p161 = scmp.eq.s32.totalorder %s160, 0
      %s163 = sadd.s32 %s162, 1
      %s164 = scalar_select %p161, %s162, %s163
      %p167 = pneg %p161
      %p168 = scmp.eq.s32.totalorder %s16, 7
      %p169 = por %p167, %p168
      %p170 = scmp.ne.s32.totalorder %s162, %s165
      %p171 = scmp.eq.s32.totalorder %s16, 0
      %p172 = por %p170, %p171
      %p173 = scmp.ne.s32.totalorder %s162, %s165
      %p174 = scmp.eq.s32.totalorder %s21, 7
      %p175 = por %p173, %p174
      %p176 = scmp.ne.s32.totalorder %s165, %s166
      %p177 = scmp.eq.s32.totalorder %s21, 0
      %p178 = por %p176, %p177
      %p179 = scmp.ne.s32.totalorder %s165, %s166
      %p180 = scmp.eq.s32.totalorder %s22, 7
      %p181 = por %p179, %p180
      %p183 = scmp.ne.s32.totalorder %s166, %s182
      %p184 = scmp.eq.s32.totalorder %s22, 0
      %p185 = por %p183, %p184
      %p186 = scmp.le.s32.totalorder 1, %s16
      %p187 = scmp.lt.s32.totalorder %s16, 9
      %p188 = pnand %p186, %p187
      %p189 = pneg %p188
      // Predicated region
      $region9: #{my_autoencoder_forward.1} parent=5 // pred_check
        _
      $region10: #{my_autoencoder_forward.1} parent=5 // pred_check_branch
        %191 = sbr.rel (%p188) target = $region12
      $region11: #{my_autoencoder_forward.1} parent=5 // pred_region
        %s192 = ssub.s32 %s16, 1
        // Predicated region
        $region13: #{my_autoencoder_forward.1} parent=11 // pred_check
          %p193 = pneg %p63
        $region14: #{my_autoencoder_forward.1} parent=11 // pred_check_branch
          %195 = sbr.rel (%p193) target = $region16
        $region15: #{my_autoencoder_forward.1} parent=11 // pred_region
          _
        $region16: #{my_autoencoder_forward.1} parent=11 // pred_fallthru
          _
        // Predicated region
        $region17: #{my_autoencoder_forward.1} parent=11 // pred_check
          %p196 = pneg %p84
        $region18: #{my_autoencoder_forward.1} parent=11 // pred_check_branch
          %198 = sbr.rel (%p196) target = $region20
        $region19: #{my_autoencoder_forward.1} parent=11 // pred_region
          _
        $region20: #{my_autoencoder_forward.1} parent=11 // pred_fallthru
          _
        // Predicated region
        $region21: #{my_autoencoder_forward.1} parent=11 // pred_check
          %p199 = pneg %p105
        $region22: #{my_autoencoder_forward.1} parent=11 // pred_check_branch
          %201 = sbr.rel (%p199) target = $region24
        $region23: #{my_autoencoder_forward.1} parent=11 // pred_region
          _
        $region24: #{my_autoencoder_forward.1} parent=11 // pred_fallthru
          _
        // Predicated region
        $region25: #{my_autoencoder_forward.1} parent=11 // pred_check
          %p202 = pneg %p126
        $region26: #{my_autoencoder_forward.1} parent=11 // pred_check_branch
          %204 = sbr.rel (%p202) target = $region28
        $region27: #{my_autoencoder_forward.1} parent=11 // pred_region
          _
        $region28: #{my_autoencoder_forward.1} parent=11 // pred_fallthru
          _
      $region12: #{my_autoencoder_forward.1} parent=5 // pred_fallthru
        _
      %p205 = scmp.lt.s32.totalorder %s16, 8
      // Predicated region
      $region29: #{my_autoencoder_forward.1} parent=5 // pred_check
        %p206 = pneg %p205
      $region30: #{my_autoencoder_forward.1} parent=5 // pred_check_branch
        %208 = sbr.rel (%p206) target = $region32
      $region31: #{my_autoencoder_forward.1} parent=5 // pred_region
        // Predicated region
        $region33: #{my_autoencoder_forward.1} parent=31 // pred_check
          %p209 = pneg %p36
        $region34: #{my_autoencoder_forward.1} parent=31 // pred_check_branch
          %211 = sbr.rel (%p209) target = $region36
        $region35: #{my_autoencoder_forward.1} parent=31 // pred_region
          %p212 = scmp.lt.s32.totalorder %s16, 7
          %s213 = scalar_select %p212, %s16, 7
          %s214 = smul.addr %s213, 2
          %s215 = smul.addr %s214, 8
          %s216 = scalar_lea.vmem %s0, %s215
        $region36: #{my_autoencoder_forward.1} parent=31 // pred_fallthru
          _
      $region32: #{my_autoencoder_forward.1} parent=5 // pred_fallthru
        _
      %p217 = scmp.le.s32.totalorder 1, %s16
      %p218 = scmp.lt.s32.totalorder %s16, 9
      %p219 = pnand %p217, %p218
      %p220 = pneg %p219
      // Predicated region
      $region37: #{my_autoencoder_forward.1} parent=5 // pred_check
        _
      $region38: #{my_autoencoder_forward.1} parent=5 // pred_check_branch
        %222 = sbr.rel (%p219) target = $region40
      $region39: #{my_autoencoder_forward.1} parent=5 // pred_region
        %s223 = ssub.s32 %s16, 1
        %p224 = scmp.lt.s32.totalorder %s21, 7
        %s225 = scalar_select %p224, %s21, 7
        %s226 = smul.addr %s225, 2
        %s227 = smul.addr %s226, 8
        %s228 = scalar_lea.vmem %s0, %s227
        %p229 = pneg %p42
        %p230 = pneg %p39
        %p231 = pneg %p63
        %p232 = pneg %p60
        %p233 = pneg %p84
        %p234 = pneg %p81
        %p235 = pneg %p105
        %p236 = pneg %p102
        %p237 = pneg %p126
        %p238 = pneg %p123
        %p239 = pneg %p152
        %p240 = pneg %p149
        %p241 = scmp.lt.s32.totalorder %s21, 7
        %s242 = scalar_select %p241, %s21, 7
        %s243 = smul.addr %s242, 8
        %s244 = scalar_lea.vmem %s5, %s243
        %p245 = pneg %p178
        %p246 = pneg %p175
        %s247 = sand.u32 %s165, 1
        %s248 = scalar_lea.sflag [#allocation3], %s247
        %s249 = sand.u32 %s165, 1
        %s250 = smul.addr %s249, 16
        %s251 = scalar_lea.vmem [#allocation2], %s250
        %p252 = scmp.lt.s32.totalorder %s21, 7
        %s253 = scalar_select %p252, %s21, 7
        %s254 = smul.addr %s253, 2
        %s255 = smul.addr %s254, 8
        %s256 = scalar_lea.vmem %s0, %s255
        %p257 = scmp.lt.s32.totalorder %s21, 7
        %s258 = scalar_select %p257, %s21, 7
        %s259 = smul.addr %s258, 8
        %s260 = scalar_lea.vmem %s5, %s259
        %v261 = vld [vmem:[%s256] sm:$0xff]
        %v262 = vld [vmem:[%s256 + $0x8] sm:$0xff]
        %v263 = vld [vmem:[%s1] sm:$0xff]
        %v264 = vld [vmem:[%s1 + $0x8] sm:$0xff]
        %v265 = vld [vmem:[%s1 + $0x10] sm:$0xff]
        %v266 = vld [vmem:[%s1 + $0x18] sm:$0xff]
        %v267 = vld [vmem:[%s1 + $0x20] sm:$0xff]
        %v268 = vld [vmem:[%s1 + $0x28] sm:$0xff]
        %v269 = vld [vmem:[%s1 + $0x30] sm:$0xff]
        %v270 = vld [vmem:[%s1 + $0x38] sm:$0xff]
        %v271 = vld [vmem:[%s1 + $0x40] sm:$0xff]
        %v272 = vld [vmem:[%s1 + $0x48] sm:$0xff]
        %v273 = vld [vmem:[%s1 + $0x50] sm:$0xff]
        %v274 = vld [vmem:[%s1 + $0x58] sm:$0xff]
        %v275 = vld [vmem:[%s1 + $0x60] sm:$0xff]
        %v276 = vld [vmem:[%s1 + $0x68] sm:$0xff]
        %v277 = vld [vmem:[%s1 + $0x70] sm:$0xff]
        %v278 = vld [vmem:[%s1 + $0x78] sm:$0xff]
        %v279 = vld [vmem:[%s1 + $0x80] sm:$0xff]
        %v280 = vld [vmem:[%s1 + $0x88] sm:$0xff]
        %v281 = vld [vmem:[%s1 + $0x90] sm:$0xff]
        %v282 = vld [vmem:[%s1 + $0x98] sm:$0xff]
        %v283 = vld [vmem:[%s1 + $0xa0] sm:$0xff]
        %v284 = vld [vmem:[%s1 + $0xa8] sm:$0xff]
        %v285 = vld [vmem:[%s1 + $0xb0] sm:$0xff]
        %v286 = vld [vmem:[%s1 + $0xb8] sm:$0xff]
        %v287 = vld [vmem:[%s1 + $0xc0] sm:$0xff]
        %v288 = vld [vmem:[%s1 + $0xc8] sm:$0xff]
        %v289 = vld [vmem:[%s1 + $0xd0] sm:$0xff]
        %v290 = vld [vmem:[%s1 + $0xd8] sm:$0xff]
        %v291 = vld [vmem:[%s1 + $0xe0] sm:$0xff]
        %v292 = vld [vmem:[%s1 + $0xe8] sm:$0xff]
        %v293 = vld [vmem:[%s1 + $0xf0] sm:$0xff]
        %v294 = vld [vmem:[%s1 + $0xf8] sm:$0xff]
        %v295 = vld [vmem:[%s2] sm:$0x1]
        %v297 = vlaneseq
        %v298 = vshrl.u32 %v297, 7
        %v299 = vsub.s32 0, %v298
        %v300 = vrot.slane %v295, %v299
        %302 = vmatprep.subr.mxu0 0.0
        %303 = vmatpush1.msra.mxu0 %v263
        %304 = vmatprep.subr.mxu0 0.0
        %305 = vmatpush1.msra.mxu0 %v264
        %306 = vmatprep.subr.mxu0 0.0
        %307 = vmatpush1.msra.mxu0 %v265
        %308 = vmatprep.subr.mxu0 0.0
        %309 = vmatpush1.msra.mxu0 %v266
        %310 = vmatprep.subr.mxu0 0.0
        %311 = vmatpush1.msra.mxu0 %v267
        %312 = vmatprep.subr.mxu0 0.0
        %313 = vmatpush1.msra.mxu0 %v268
        %314 = vmatprep.subr.mxu0 0.0
        %315 = vmatpush1.msra.mxu0 %v269
        %316 = vmatprep.subr.mxu0 0.0
        %317 = vmatpush1.msra.mxu0 %v270
        %318 = vmatprep.subr.mxu0 0.0
        %319 = vmatpush1.msra.mxu0 %v271
        %320 = vmatprep.subr.mxu0 0.0
        %321 = vmatpush1.msra.mxu0 %v272
        %322 = vmatprep.subr.mxu0 0.0
        %323 = vmatpush1.msra.mxu0 %v273
        %324 = vmatprep.subr.mxu0 0.0
        %325 = vmatpush1.msra.mxu0 %v274
        %326 = vmatprep.subr.mxu0 0.0
        %327 = vmatpush1.msra.mxu0 %v275
        %328 = vmatprep.subr.mxu0 0.0
        %329 = vmatpush1.msra.mxu0 %v276
        %330 = vmatprep.subr.mxu0 0.0
        %331 = vmatpush1.msra.mxu0 %v277
        %332 = vmatprep.subr.mxu0 0.0
        %333 = vmatpush1.msra.mxu0 %v278
        %334 = vmatprep.subr.mxu0 0.0
        %335 = vmatpush1.msra.mxu0 %v279
        %336 = vmatprep.subr.mxu0 0.0
        %337 = vmatpush1.msra.mxu0 %v280
        %338 = vmatprep.subr.mxu0 0.0
        %339 = vmatpush1.msra.mxu0 %v281
        %340 = vmatprep.subr.mxu0 0.0
        %341 = vmatpush1.msra.mxu0 %v282
        %342 = vmatprep.subr.mxu0 0.0
        %343 = vmatpush1.msra.mxu0 %v283
        %344 = vmatprep.subr.mxu0 0.0
        %345 = vmatpush1.msra.mxu0 %v284
        %346 = vmatprep.subr.mxu0 0.0
        %347 = vmatpush1.msra.mxu0 %v285
        %348 = vmatprep.subr.mxu0 0.0
        %349 = vmatpush1.msra.mxu0 %v286
        %350 = vmatprep.subr.mxu0 0.0
        %351 = vmatpush1.msra.mxu0 %v287
        %352 = vmatprep.subr.mxu0 0.0
        %353 = vmatpush1.msra.mxu0 %v288
        %354 = vmatprep.subr.mxu0 0.0
        %355 = vmatpush1.msra.mxu0 %v289
        %356 = vmatprep.subr.mxu0 0.0
        %357 = vmatpush1.msra.mxu0 %v290
        %358 = vmatprep.subr.mxu0 0.0
        %359 = vmatpush1.msra.mxu0 %v291
        %360 = vmatprep.subr.mxu0 0.0
        %361 = vmatpush1.msra.mxu0 %v292
        %362 = vmatprep.subr.mxu0 0.0
        %363 = vmatpush1.msra.mxu0 %v293
        %364 = vmatprep.subr.mxu0 0.0
        %365 = vmatpush1.msra.mxu0 %v294
        %366 = vmatprep.mubr.f32.mxu0 %v262
        %367 = vmatmul.mubr.f32.gmra.mrb[0].mxu0 %v261
        %v368 = vpop.f32.mrb[0].mxu0
        %v369 = vadd.f32 %v300, %v368
        %v370 = vpop.f32.mrb[0].mxu0
        %371 = vdwg.mxu0
        %v372 = vtanh.pop %v369
        %vm373 = vcmask 261120
        %374 = vst.msk [vmem:[%s260] sm:$0xff] %vm373, %v372
        %v375 = vld [vmem:[%s3] sm:$0xff]
        %v376 = vld [vmem:[%s3 + $0x8] sm:$0xff]
        %v377 = vld [vmem:[%s3 + $0x10] sm:$0xff]
        %v378 = vld [vmem:[%s3 + $0x18] sm:$0xff]
        %v379 = vld [vmem:[%s3 + $0x20] sm:$0xff]
        %v380 = vld [vmem:[%s3 + $0x28] sm:$0xff]
        %v381 = vld [vmem:[%s3 + $0x30] sm:$0xff]
        %v382 = vld [vmem:[%s3 + $0x38] sm:$0xff]
        %v383 = vld [vmem:[%s4] sm:$0x3]
        %v385 = vlaneseq
        %v386 = vshrl.u32 %v385, 7
        %v387 = vsub.s32 0, %v386
        %v388 = vrot.slane %v383, %v387
        %v389 = vlaneseq
        %v390 = vshrl.u32 %v389, 7
        %v391 = vsub.s32 1, %v390
        %v392 = vrot.slane %v383, %v391
        %v396 = vsel %vm373, %v372, 0
        %398 = vmatprep.subr.mxu0 %v376
        %399 = vmatpush1.msra.mxu0 %v375
        %400 = vmatprep.subr.mxu0 %v378
        %401 = vmatpush1.msra.mxu0 %v377
        %402 = vmatprep.subr.mxu0 %v380
        %403 = vmatpush1.msra.mxu0 %v379
        %404 = vmatprep.subr.mxu0 %v382
        %405 = vmatpush1.msra.mxu0 %v381
        %406 = vmatprep.subr.mxu0 0.0
        %407 = vmatpush1.msra.mxu0 0.0
        %408 = vmatprep.subr.mxu0 0.0
        %409 = vmatpush1.msra.mxu0 0.0
        %410 = vmatprep.subr.mxu0 0.0
        %411 = vmatpush1.msra.mxu0 0.0
        %412 = vmatprep.subr.mxu0 0.0
        %413 = vmatpush1.msra.mxu0 0.0
        %414 = vmatprep.subr.mxu0 0.0
        %415 = vmatpush1.msra.mxu0 0.0
        %416 = vmatprep.subr.mxu0 0.0
        %417 = vmatpush1.msra.mxu0 0.0
        %418 = vmatprep.subr.mxu0 0.0
        %419 = vmatpush1.msra.mxu0 0.0
        %420 = vmatprep.subr.mxu0 0.0
        %421 = vmatpush1.msra.mxu0 0.0
        %422 = vmatprep.subr.mxu0 0.0
        %423 = vmatpush1.msra.mxu0 0.0
        %424 = vmatprep.subr.mxu0 0.0
        %425 = vmatpush1.msra.mxu0 0.0
        %426 = vmatprep.subr.mxu0 0.0
        %427 = vmatpush1.msra.mxu0 0.0
        %428 = vmatprep.subr.mxu0 0.0
        %429 = vmatpush1.msra.mxu0 0.0
        %430 = vmatprep.subr.mxu0 0.0
        %431 = vmatpush1.msra.mxu0 0.0
        %432 = vmatprep.subr.mxu0 0.0
        %433 = vmatpush1.msra.mxu0 0.0
        %434 = vmatprep.subr.mxu0 0.0
        %435 = vmatpush1.msra.mxu0 0.0
        %436 = vmatprep.subr.mxu0 0.0
        %437 = vmatpush1.msra.mxu0 0.0
        %438 = vmatprep.subr.mxu0 0.0
        %439 = vmatpush1.msra.mxu0 0.0
        %440 = vmatprep.subr.mxu0 0.0
        %441 = vmatpush1.msra.mxu0 0.0
        %442 = vmatprep.subr.mxu0 0.0
        %443 = vmatpush1.msra.mxu0 0.0
        %444 = vmatprep.subr.mxu0 0.0
        %445 = vmatpush1.msra.mxu0 0.0
        %446 = vmatprep.subr.mxu0 0.0
        %447 = vmatpush1.msra.mxu0 0.0
        %448 = vmatprep.subr.mxu0 0.0
        %449 = vmatpush1.msra.mxu0 0.0
        %450 = vmatprep.subr.mxu0 0.0
        %451 = vmatpush1.msra.mxu0 0.0
        %452 = vmatprep.subr.mxu0 0.0
        %453 = vmatpush1.msra.mxu0 0.0
        %454 = vmatprep.subr.mxu0 0.0
        %455 = vmatpush1.msra.mxu0 0.0
        %456 = vmatprep.subr.mxu0 0.0
        %457 = vmatpush1.msra.mxu0 0.0
        %458 = vmatprep.subr.mxu0 0.0
        %459 = vmatpush1.msra.mxu0 0.0
        %460 = vmatprep.subr.mxu0 0.0
        %461 = vmatpush1.msra.mxu0 0.0
        %462 = vmatprep.mubr.f32.mxu0 0.0
        %463 = vmatmul.mubr.f32.gmra.mrb[0].mxu0 %v396
        %v464 = vpop.f32.mrb[0].mxu0
        %v465 = vadd.f32 %v388, %v464
        %v466 = vpop.f32.mrb[0].mxu0
        %v467 = vadd.f32 %v392, %v466
        %468 = vdwg.mxu0
        %469 = vst [vmem:[%s251] sm:$0xff] %v465
        %470 = vst [vmem:[%s251 + $0x8] sm:$0xff] %v467
        %p471 = scmp.lt.s32.totalorder %s21, 7
        %s472 = scalar_select %p471, %s21, 7
        %s473 = smul.addr %s472, 8
        %s474 = scalar_lea.vmem %s5, %s473
        %s475 = sand.u32 %s165, 1
        %s476 = scalar_lea.sflag [#allocation3], %s475
        %s477 = sand.u32 %s165, 1
        %s478 = smul.addr %s477, 16
        %s479 = scalar_lea.vmem [#allocation2], %s478
        // Predicated region
        $region41: #{my_autoencoder_forward.1} parent=39 // pred_check
          %p480 = pneg %p149
        $region42: #{my_autoencoder_forward.1} parent=39 // pred_check_branch
          %482 = sbr.rel (%p480) target = $region44
        $region43: #{my_autoencoder_forward.1} parent=39 // pred_region
          _
        $region44: #{my_autoencoder_forward.1} parent=39 // pred_fallthru
          _
        // Predicated region
        $region45: #{my_autoencoder_forward.1} parent=39 // pred_check
          %p483 = pneg %p175
        $region46: #{my_autoencoder_forward.1} parent=39 // pred_check_branch
          %485 = sbr.rel (%p483) target = $region48
        $region47: #{my_autoencoder_forward.1} parent=39 // pred_region
          %s487 = ssub.s32 256, 256
          %488 = vsyncadd %s476, %s487
          %s489 = smul.addr %s21, 2
          %s490 = smul.addr %s489, 128
          %s491 = scalar_lea.hbm %s6, %s490
          %s493 = sshll.u32 %s479, 4
          %s494 = int_to_ptr.vmem [resolvable:$true] %s493
          %496 = dma.vmem_to_hbm [thread:$0]  %s494, 256, %s491, %s476
        $region48: #{my_autoencoder_forward.1} parent=39 // pred_fallthru
          _
      $region40: #{my_autoencoder_forward.1} parent=5 // pred_fallthru
        _
      %p497 = scmp.le.s32.totalorder 2, %s16
      // Predicated region
      $region49: #{my_autoencoder_forward.1} parent=5 // pred_check
        %p498 = pneg %p497
      $region50: #{my_autoencoder_forward.1} parent=5 // pred_check_branch
        %500 = sbr.rel (%p498) target = $region52
      $region51: #{my_autoencoder_forward.1} parent=5 // pred_region
        %s501 = ssub.s32 %s16, 2
        // Predicated region
        $region53: #{my_autoencoder_forward.1} parent=51 // pred_check
          %p502 = pneg %p155
        $region54: #{my_autoencoder_forward.1} parent=51 // pred_check_branch
          %504 = sbr.rel (%p502) target = $region56
        $region55: #{my_autoencoder_forward.1} parent=51 // pred_region
          %p505 = scmp.lt.s32.totalorder %s22, 7
          %s506 = scalar_select %p505, %s22, 7
          %s507 = smul.addr %s506, 8
          %s508 = scalar_lea.vmem %s5, %s507
        $region56: #{my_autoencoder_forward.1} parent=51 // pred_fallthru
          _
        // Predicated region
        $region57: #{my_autoencoder_forward.1} parent=51 // pred_check
          %p509 = pneg %p181
        $region58: #{my_autoencoder_forward.1} parent=51 // pred_check_branch
          %511 = sbr.rel (%p509) target = $region60
        $region59: #{my_autoencoder_forward.1} parent=51 // pred_region
          %s512 = sand.u32 %s166, 1
          %s513 = scalar_lea.sflag [#allocation3], %s512
          %s514 = sand.u32 %s166, 1
          %s515 = smul.addr %s514, 16
          %s516 = scalar_lea.vmem [#allocation2], %s515
          %517 = dma.done %s513, 256
        $region60: #{my_autoencoder_forward.1} parent=51 // pred_fallthru
          _
      $region52: #{my_autoencoder_forward.1} parent=5 // pred_fallthru
        _
    $region6: #{my_autoencoder_forward.1} parent=1 // loop_footer
      %s20 = sadd.s32 1, %s16
    $region7: #{my_autoencoder_forward.1} parent=1 // loop_footer_branch
      %15 = sbr.rel target = $region3
    $region8: #{my_autoencoder_forward.1} parent=1 // loop_exit
      _
    %518 = vsyncpa [#allocation3], 1
    %s519 = scalar_lea.sflag [#allocation3], 1
    %520 = vsyncpa %s519, 1

</llo_original>
